<compile_context>
chip_gen: v7x
topology: tpu7x:2x2x1
jax: 0.10.0
libtpu: 0.0.40
codegen_flags: <defaults>
</compile_context>

<pallas_src>
import functools

import jax
import jax.numpy as jnp
from jax.experimental import pallas as pl
from jax.experimental.pallas import tpu as pltpu


def _round_up(x, m):
    return (x + m - 1) // m * m


def _slab_layout(M, P, H):
    """Static row/col layout of the packed parameter slab (all offsets 8-aligned)."""
    ppad = _round_up(P, 8)                # padded property axis (one-hot width)
    mpad = _round_up(M, 8)                # pmw^T rows, padded so (pmw@W1)^T starts aligned
    t_rows = mpad + H                     # fused gather table T^T = [pmw^T ; (pmw@W1)^T]
    off_ln = _round_up(t_rows, 8)         # [b1 | gamma | beta] as columns, H rows
    off_w2 = _round_up(off_ln + H, 8)     # W2^T, M rows x H cols
    off_b2 = _round_up(off_w2 + M, 8)     # b2 as a column, M rows
    rows = _round_up(off_b2 + M, 8)
    cols = max(H, ppad, 8)
    return ppad, mpad, t_rows, off_ln, off_w2, off_b2, rows, cols


def _pack_slab(pmw, w1, b1, ln_g, ln_b, w2, b2):
    """Pack all parameters (and the folded pmw @ W1 table) into one f32 slab."""
    P, M = pmw.shape
    H = w1.shape[1]
    _, mpad, _, off_ln, off_w2, off_b2, rows, cols = _slab_layout(M, P, H)
    slab = jnp.zeros((rows, cols), jnp.float32)
    slab = slab.at[0:M, 0:P].set(pmw.T)                       # pmw^T
    slab = slab.at[mpad:mpad + H, 0:P].set((pmw @ w1).T)      # (pmw @ W1)^T  (gather+Linear fold)
    slab = slab.at[off_ln:off_ln + H, 0].set(b1)
    slab = slab.at[off_ln:off_ln + H, 1].set(ln_g)
    slab = slab.at[off_ln:off_ln + H, 2].set(ln_b)
    slab = slab.at[off_w2:off_w2 + M, 0:H].set(w2.T)          # W2^T
    slab = slab.at[off_b2:off_b2 + M, 0].set(b2)
    return slab


def _dkw_kernel(idx_ref, slab_ref, out_ref, *, n_modalities, n_property_types,
                hidden_dim, apply_transform):
    """Gather(+Linear fold) -> LayerNorm -> ReLU -> Linear -> residual -> softmax.

    All math is done transposed: batch on the lane axis, modalities/hidden on
    the sublane axis, so the output store is lane-dense.
    """
    M, P, H = n_modalities, n_property_types, hidden_dim
    ppad, mpad, t_rows, off_ln, off_w2, off_b2, _, _ = _slab_layout(M, P, H)

    idx = idx_ref[...]                                        # [1, Bt] int32 (lane-major)
    bt = idx.shape[1]

    # Fused gather + first Linear via one small one-hot MXU dot.
    # TODO(synk): out-of-range / negative indices produce an all-zero one-hot
    # row (-> uniform softmax) instead of raising like torch gather would.
    tbl = slab_ref[0:t_rows, 0:ppad]                          # [mpad+H, ppad]
    onehot = (jax.lax.broadcasted_iota(jnp.int32, (ppad, bt), 0)
              == idx).astype(jnp.float32)                     # [ppad, Bt]
    gathered = jnp.dot(tbl, onehot,
                       preferred_element_type=jnp.float32)    # [mpad+H, Bt]
    init_w = gathered[0:M, :]                                 # pmw[idx]^T            [M, Bt]

    if apply_transform:
        ln = slab_ref[off_ln:off_ln + H, 0:8]                 # [H, 8]
        b1, gam, beta = ln[:, 0:1], ln[:, 1:2], ln[:, 2:3]    # [H, 1] each
        w2_t = slab_ref[off_w2:off_w2 + M, 0:H]               # [M, H]
        b2 = slab_ref[off_b2:off_b2 + M, 0:1]                 # [M, 1]

        h = gathered[mpad:mpad + H, :] + b1                   # (pmw@W1)[idx]^T + b1  [H, Bt]

        # Fused LayerNorm statistics: one pass -> E[x], E[x^2] (sublane reduce).
        inv_h = 1.0 / H
        mean = jnp.sum(h, axis=0, keepdims=True) * inv_h      # [1, Bt]
        ex2 = jnp.sum(h * h, axis=0, keepdims=True) * inv_h   # [1, Bt]
        var = ex2 - mean * mean
        scale = jax.lax.rsqrt(var + 1e-5) * gam               # gamma folded into rsqrt scale
        hn = (h - mean) * scale + beta
        hr = jnp.maximum(hn, 0.0)                             # ReLU

        fp = jnp.dot(w2_t, hr,
                     preferred_element_type=jnp.float32) + b2  # [M, Bt]
        combined = init_w + fp                                 # residual
    else:
        combined = init_w

    # softmax over the modality (sublane) axis
    mmax = jnp.max(combined, axis=0, keepdims=True)
    e = jnp.exp(combined - mmax)
    denom = jnp.sum(e, axis=0, keepdims=True)
    out_ref[...] = e * pl.reciprocal(denom, approx=True)      # EUP reciprocal


# Max batch rows per grid step (multiple of 128).  Live footprint per step is
# ~0.6 MiB at 1024 rows -> safe on v5e/v6e/v7x default scoped VMEM limits.
_DEFAULT_MAX_B_TILE = 1024


def domain_knowledge_weights(params, property_indices=None, mol_fingerprints=None,
                             *, block_b=None):
    """Pallas wrapper for DomainKnowledgeBasedWeights.forward.

    property_indices: optional int [B]
    mol_fingerprints: optional [B, F]; only its *presence* gates the
                      weight_transform path (values unused, matching PyTorch).
    block_b: optional batch tile override (multiple of 128) for testing the grid.
    Returns f32 [B, n_modalities] softmax weights.
    """
    pmw = params["pmw"]
    P, M = pmw.shape
    H = params["w1"].shape[1]

    if property_indices is None:
        # PyTorch None-path: batch of 1 with uniform 1/M initial weights; the
        # transform still applies if fingerprints are given (matches module).
        batch = 1
        idx = jnp.zeros((1,), jnp.int32)
        pmw_eff = jnp.full_like(pmw, 1.0 / M)
    else:
        idx = property_indices.astype(jnp.int32).reshape(-1)
        batch = idx.shape[0]
        pmw_eff = pmw

    slab = _pack_slab(pmw_eff, params["w1"], params["b1"], params["ln_g"],
                      params["ln_b"], params["w2"], params["b2"])
    R, C = slab.shape

    max_tile = _DEFAULT_MAX_B_TILE if block_b is None else block_b
    if batch <= max_tile:
        b_tile = batch
        b_pad = batch
    else:
        b_tile = max_tile                       # must be a multiple of 128
        b_pad = _round_up(batch, b_tile)

    # Lane-major index row, zero-padded (index 0 is always valid; padded rows
    # are computed and discarded).
    idx_row = jnp.zeros((1, b_pad), jnp.int32).at[0, :batch].set(idx)

    kernel = functools.partial(
        _dkw_kernel, n_modalities=M, n_property_types=P, hidden_dim=H,
        apply_transform=mol_fingerprints is not None)

    out_t = pl.pallas_call(
        kernel,
        out_shape=jax.ShapeDtypeStruct((M, b_pad), jnp.float32),
        grid=(b_pad // b_tile,),
        in_specs=[
            pl.BlockSpec((1, b_tile), lambda i: (0, i)),   # indices, tiled over batch
            pl.BlockSpec((R, C), lambda i: (0, 0)),        # packed params, resident
        ],
        out_specs=pl.BlockSpec((M, b_tile), lambda i: (0, i)),  # lane-dense [M, B] slab
        compiler_params=pltpu.CompilerParams(
            dimension_semantics=("parallel",)),
    )(idx_row, slab)

    return out_t[:, :batch].T                                # back to [B, M]


def make_params(n_modalities=4, n_property_types=5, hidden_dim=64,
                key=jax.random.PRNGKey(0)):
    """Parameter init mirroring the PyTorch module (Linear weights stored [in, out])."""
    k1, k2, k3, k4 = jax.random.split(key, 4)
    bound1 = 1.0 / jnp.sqrt(jnp.float32(n_modalities))
    bound2 = 1.0 / jnp.sqrt(jnp.float32(hidden_dim))
    return {
        "pmw": jnp.ones((n_property_types, n_modalities), jnp.float32),
        "w1": jax.random.uniform(k1, (n_modalities, hidden_dim), jnp.float32,
                                 -bound1, bound1),
        "b1": jax.random.uniform(k2, (hidden_dim,), jnp.float32, -bound1, bound1),
        "ln_g": jnp.ones((hidden_dim,), jnp.float32),
        "ln_b": jnp.zeros((hidden_dim,), jnp.float32),
        "w2": jax.random.uniform(k3, (hidden_dim, n_modalities), jnp.float32,
                                 -bound2, bound2),
        "b2": jax.random.uniform(k4, (n_modalities,), jnp.float32, -bound2, bound2),
    }


def _reference(params, property_indices, mol_fingerprints):
    """Pure-JAX reference mirroring the PyTorch forward."""
    M = params["pmw"].shape[1]
    if property_indices is None:
        init_w = jnp.full((1, M), 1.0 / M, jnp.float32)
    else:
        init_w = params["pmw"][property_indices]
    if mol_fingerprints is not None:
        h = init_w @ params["w1"] + params["b1"]
        mean = jnp.mean(h, axis=-1, keepdims=True)
        var = jnp.mean((h - mean) ** 2, axis=-1, keepdims=True)
        hn = (h - mean) * jax.lax.rsqrt(var + 1e-5) * params["ln_g"] + params["ln_b"]
        hr = jnp.maximum(hn, 0.0)
        comb = init_w + (hr @ params["w2"] + params["b2"])
    else:
        comb = init_w
    return jax.nn.softmax(comb, axis=-1)


if __name__ == "__main__":
    n_modalities, n_property_types, hidden_dim = 4, 5, 64
    batch, fp_dim = 8, 32

    params = make_params(n_modalities, n_property_types, hidden_dim,
                         key=jax.random.PRNGKey(0))

    key = jax.random.PRNGKey(0)
    k_idx, k_fp = jax.random.split(key)
    property_indices = jax.random.randint(k_idx, (batch,), 0, n_property_types,
                                          dtype=jnp.int32)
    mol_fingerprints = jax.random.normal(k_fp, (batch, fp_dim), jnp.float32)

    # 1) transform path (fingerprints present)
    w = jax.block_until_ready(
        domain_knowledge_weights(params, property_indices, mol_fingerprints))
    ref = _reference(params, property_indices, mol_fingerprints)
    assert w.shape == (batch, n_modalities)
    assert bool(jnp.all(jnp.isfinite(w)))
    assert bool(jnp.allclose(jnp.sum(w, axis=1), 1.0, atol=1e-2))  # approx reciprocal
    assert bool(jnp.allclose(w, ref, atol=1e-2))

    # 2) no-fingerprint branch (no weight_transform)
    w2 = jax.block_until_ready(
        domain_knowledge_weights(params, property_indices, None))
    ref2 = _reference(params, property_indices, None)
    assert w2.shape == (batch, n_modalities)
    assert bool(jnp.allclose(w2, ref2, atol=1e-2))

    # 3) property_indices=None branch (batch-1 uniform initial weights)
    w3 = jax.block_until_ready(
        domain_knowledge_weights(params, None, mol_fingerprints))
    ref3 = _reference(params, None, mol_fingerprints)
    assert w3.shape == (1, n_modalities)
    assert bool(jnp.allclose(w3, ref3, atol=1e-2))

    # 4) exercise the multi-step batch grid + padding path (still small shapes)
    big_idx = jax.random.randint(jax.random.PRNGKey(1), (200,), 0,
                                 n_property_types, dtype=jnp.int32)
    big_fp = jnp.ones((200, fp_dim), jnp.float32)
    w4 = jax.block_until_ready(
        domain_knowledge_weights(params, big_idx, big_fp, block_b=128))
    ref4 = _reference(params, big_idx, big_fp)
    assert w4.shape == (200, n_modalities)
    assert bool(jnp.allclose(w4, ref4, atol=1e-2))

    print("KERNEL_OK")
</pallas_src>

<mosaic_0001>
module attributes {stable_mosaic.version = 11 : i64} {
  func.func @_dkw_kernel(%arg0: i32, %arg1: memref<1x8xi32, #tpu.memory_space<vmem>>, %arg2: memref<152x64xf32, #tpu.memory_space<vmem>>, %arg3: memref<4x8xf32, #tpu.memory_space<vmem>>) attributes {dimension_semantics = [#tpu.dimension_semantics<parallel>], iteration_bounds = array<i64: 1>, scalar_prefetch = 0 : i64, scratch_operands = 0 : i64, tpu.core_type = #tpu.core_type<tc>, window_params = [{transform_indices = @transform_0, window_bounds = array<i64: 1, 8>}, {pipeline_mode = #tpu.pipeline_mode<synchronous>, transform_indices = @transform_1, window_bounds = array<i64: 152, 64>}, {transform_indices = @transform_2, window_bounds = array<i64: 4, 8>}]} {
    %c0 = arith.constant 0 : index
    %c0_0 = arith.constant 0 : index
    %0 = vector.load %arg1[%c0, %c0_0] : memref<1x8xi32, #tpu.memory_space<vmem>>, vector<1x8xi32>
    %c0_1 = arith.constant 0 : index
    %c0_2 = arith.constant 0 : index
    %1 = vector.load %arg2[%c0_1, %c0_2] : memref<152x64xf32, #tpu.memory_space<vmem>>, vector<72x8xf32>
    %2 = tpu.iota {dimensions = array<i32: 0>} : vector<8x8xi32>
    %3 = vector.broadcast %0 : vector<1x8xi32> to vector<8x8xi32>
    %4 = arith.cmpi eq, %2, %3 : vector<8x8xi32>
    %5 = arith.extui %4 : vector<8x8xi1> to vector<8x8xi32>
    %6 = arith.sitofp %5 : vector<8x8xi32> to vector<8x8xf32>
    %cst = arith.constant dense<0.000000e+00> : vector<72x8xf32>
    %7 = tpu.matmul %1, %6, %cst {dimension_numbers = #tpu.dot_dimension_numbers<[1], [0], [0], [1], [0, 0, 1, 1], [], []>} : vector<72x8xf32>, vector<8x8xf32>, vector<72x8xf32> -> vector<72x8xf32>
    %8 = vector.extract_strided_slice %7 {offsets = [0, 0], sizes = [4, 8], strides = [1, 1]} : vector<72x8xf32> to vector<4x8xf32>
    %c72 = arith.constant 72 : index
    %c0_3 = arith.constant 0 : index
    %9 = vector.load %arg2[%c72, %c0_3] : memref<152x64xf32, #tpu.memory_space<vmem>>, vector<64x8xf32>
    %10 = vector.extract_strided_slice %9 {offsets = [0, 0], sizes = [64, 1], strides = [1, 1]} : vector<64x8xf32> to vector<64x1xf32>
    %11 = vector.extract_strided_slice %9 {offsets = [0, 1], sizes = [64, 1], strides = [1, 1]} : vector<64x8xf32> to vector<64x1xf32>
    %12 = vector.extract_strided_slice %9 {offsets = [0, 2], sizes = [64, 1], strides = [1, 1]} : vector<64x8xf32> to vector<64x1xf32>
    %c136 = arith.constant 136 : index
    %c0_4 = arith.constant 0 : index
    %13 = vector.load %arg2[%c136, %c0_4] : memref<152x64xf32, #tpu.memory_space<vmem>>, vector<4x64xf32>
    %c144 = arith.constant 144 : index
    %c0_5 = arith.constant 0 : index
    %14 = vector.load %arg2[%c144, %c0_5] : memref<152x64xf32, #tpu.memory_space<vmem>>, vector<4x1xf32>
    %15 = vector.extract_strided_slice %7 {offsets = [8, 0], sizes = [64, 8], strides = [1, 1]} : vector<72x8xf32> to vector<64x8xf32>
    %16 = vector.broadcast %10 : vector<64x1xf32> to vector<64x8xf32>
    %17 = arith.addf %15, %16 : vector<64x8xf32>
    %cst_6 = arith.constant dense<0.000000e+00> : vector<8xf32>
    %18 = vector.multi_reduction <add>, %17, %cst_6 [0] : vector<64x8xf32> to vector<8xf32>
    %19 = vector.shape_cast %18 : vector<8xf32> to vector<1x8xf32>
    %cst_7 = arith.constant 1.562500e-02 : f32
    %20 = vector.broadcast %cst_7 : f32 to vector<1x8xf32>
    %21 = arith.mulf %19, %20 : vector<1x8xf32>
    %22 = arith.mulf %17, %17 : vector<64x8xf32>
    %cst_8 = arith.constant dense<0.000000e+00> : vector<8xf32>
    %23 = vector.multi_reduction <add>, %22, %cst_8 [0] : vector<64x8xf32> to vector<8xf32>
    %24 = vector.shape_cast %23 : vector<8xf32> to vector<1x8xf32>
    %cst_9 = arith.constant 1.562500e-02 : f32
    %25 = vector.broadcast %cst_9 : f32 to vector<1x8xf32>
    %26 = arith.mulf %24, %25 : vector<1x8xf32>
    %27 = arith.mulf %21, %21 : vector<1x8xf32>
    %28 = arith.subf %26, %27 : vector<1x8xf32>
    %cst_10 = arith.constant 9.99999974E-6 : f32
    %29 = vector.broadcast %cst_10 : f32 to vector<1x8xf32>
    %30 = arith.addf %28, %29 : vector<1x8xf32>
    %31 = math.rsqrt %30 : vector<1x8xf32>
    %32 = vector.broadcast %31 : vector<1x8xf32> to vector<64x8xf32>
    %33 = vector.broadcast %11 : vector<64x1xf32> to vector<64x8xf32>
    %34 = arith.mulf %32, %33 : vector<64x8xf32>
    %35 = vector.broadcast %21 : vector<1x8xf32> to vector<64x8xf32>
    %36 = arith.subf %17, %35 : vector<64x8xf32>
    %37 = arith.mulf %36, %34 : vector<64x8xf32>
    %38 = vector.broadcast %12 : vector<64x1xf32> to vector<64x8xf32>
    %39 = arith.addf %37, %38 : vector<64x8xf32>
    %cst_11 = arith.constant 0.000000e+00 : f32
    %40 = vector.broadcast %cst_11 : f32 to vector<64x8xf32>
    %41 = arith.maximumf %39, %40 : vector<64x8xf32>
    %cst_12 = arith.constant dense<0.000000e+00> : vector<4x8xf32>
    %42 = tpu.matmul %13, %41, %cst_12 {dimension_numbers = #tpu.dot_dimension_numbers<[1], [0], [0], [1], [0, 0, 1, 1], [], []>} : vector<4x64xf32>, vector<64x8xf32>, vector<4x8xf32> -> vector<4x8xf32>
    %43 = vector.broadcast %14 : vector<4x1xf32> to vector<4x8xf32>
    %44 = arith.addf %42, %43 : vector<4x8xf32>
    %45 = arith.addf %8, %44 : vector<4x8xf32>
    %cst_13 = arith.constant dense<0xFF800000> : vector<8xf32>
    %46 = vector.multi_reduction <maximumf>, %45, %cst_13 [0] : vector<4x8xf32> to vector<8xf32>
    %47 = vector.shape_cast %46 : vector<8xf32> to vector<1x8xf32>
    %48 = vector.broadcast %47 : vector<1x8xf32> to vector<4x8xf32>
    %49 = arith.subf %45, %48 : vector<4x8xf32>
    %50 = math.exp %49 : vector<4x8xf32>
    %cst_14 = arith.constant dense<0.000000e+00> : vector<8xf32>
    %51 = vector.multi_reduction <add>, %50, %cst_14 [0] : vector<4x8xf32> to vector<8xf32>
    %52 = vector.shape_cast %51 : vector<8xf32> to vector<1x8xf32>
    %53 = tpu.reciprocal %52 {approx = true} : vector<1x8xf32> -> vector<1x8xf32>
    %54 = vector.broadcast %53 : vector<1x8xf32> to vector<4x8xf32>
    %55 = arith.mulf %50, %54 : vector<4x8xf32>
    %c0_15 = arith.constant 0 : index
    %c0_16 = arith.constant 0 : index
    %56 = vector.load %arg3[%c0_15, %c0_16] : memref<4x8xf32, #tpu.memory_space<vmem>>, vector<4x8xf32>
    tpu.vector_store %arg3[%c0_15, %c0_16], %55 {strides = array<i32>} : memref<4x8xf32, #tpu.memory_space<vmem>>, vector<4x8xf32>,
    return
  }
  func.func @transform_0(%arg0: i32) -> (i32, i32) {
    %c0_i32 = arith.constant 0 : i32
    %c0_i32_0 = arith.constant 0 : i32
    return %c0_i32, %arg0 : i32, i32
  }
  func.func @transform_1(%arg0: i32) -> (i32, i32) {
    %c0_i32 = arith.constant 0 : i32
    %c0_i32_0 = arith.constant 0 : i32
    %c0_i32_1 = arith.constant 0 : i32
    return %c0_i32, %c0_i32_0 : i32, i32
  }
  func.func @transform_2(%arg0: i32) -> (i32, i32) {
    %c0_i32 = arith.constant 0 : i32
    %c0_i32_0 = arith.constant 0 : i32
    return %c0_i32, %arg0 : i32, i32
  }
}

</mosaic_0001>

<llo_original>
// kernel: tpu_custom_call.1
$region0: #{tpu_custom_call.1}
  #allocation0 [shape = 'u32[]', space=smem, size = 0x4, offset = 0x4, fixed_abs, tag = 'smem constant byte address 0x4 - core index']
  #allocation1 [shape = 'u32[144,128]{1,0:T(1,128)}', space=vmem, size = 0x12000, scoped, tag = 'internal scratch']
  %s0 = inlined_call_operand.vmem [shape: s32[1,8], index: 0, kind: input, shape index: {}]
  %s1 = inlined_call_operand.vmem [shape: f32[152,64], index: 1, kind: input, shape index: {}]
  %s2 = inlined_call_operand.hbm [shape: f32[4,8], index: 2, kind: output, shape index: {}]
  %s3 = sld [smem:[#allocation0]]
  $region18: #{tpu_custom_call.1} parent=0
    _
  %s5 = ssub.s32 1, %s3
  %s6 = scalar_select 0, %s5, %s3
  $region1: #{tpu_custom_call.1} parent=0
    #allocation2 [shape = 'u8[2048]{0}', space=vmem, size = 0x800, scoped, tag = 'output window, operand 0, single buffered']
    #allocation3 [shape = 's32[1]{0}', space=sflag, size = 0x4, scoped, tag = 'scoped memory for tpu_custom_call.1']
    %7 = vsyncpa [#allocation3], 0
    // Predicated region
    $region2: #{tpu_custom_call.1} parent=1 // pred_check
      _
    $region3: #{tpu_custom_call.1} parent=1 // pred_check_branch
      %9 = sbr.rel (0) target = $region5
    $region4: #{tpu_custom_call.1} parent=1 // pred_region
      _
    $region5: #{tpu_custom_call.1} parent=1 // pred_fallthru
      _
    // Predicated region
    $region6: #{tpu_custom_call.1} parent=1 // pred_check
      _
    $region7: #{tpu_custom_call.1} parent=1 // pred_check_branch
      %11 = sbr.rel (0) target = $region9
    $region8: #{tpu_custom_call.1} parent=1 // pred_region
      _
    $region9: #{tpu_custom_call.1} parent=1 // pred_fallthru
      _
    %v12 = vld [vmem:[%s0] sm:$0x1]
    %v13 = vld [vmem:[%s1] sm:$0xff]
    %v14 = vld [vmem:[%s1 + $0x8] sm:$0xff]
    %v15 = vld [vmem:[%s1 + $0x10] sm:$0xff]
    %v16 = vld [vmem:[%s1 + $0x18] sm:$0xff]
    %v17 = vld [vmem:[%s1 + $0x20] sm:$0xff]
    %v18 = vld [vmem:[%s1 + $0x28] sm:$0xff]
    %v19 = vld [vmem:[%s1 + $0x30] sm:$0xff]
    %v20 = vld [vmem:[%s1 + $0x38] sm:$0xff]
    %v21 = vld [vmem:[%s1 + $0x40] sm:$0xff]
    %v22 = vlaneseq
    %v23 = vshrl.u32 %v22, 7
    %v24 = vlaneseq
    %v25 = vshrl.u32 %v24, 7
    %v26 = vsub.s32 0, %v25
    %v27 = vrot.slane %v12, %v26
    %vm28 = vcmp.eq.s32.totalorder %v23, %v27
    %v29 = vsel %vm28, 1, 0
    %v30 = vcvt.s32.f32 %v29
    %vm31 = vcmask 64512
    %v33 = vsel %vm31, %v13, 0
    %v36 = vsel %vm31, %v14, 0
    %v39 = vsel %vm31, %v15, 0
    %v42 = vsel %vm31, %v16, 0
    %v45 = vsel %vm31, %v17, 0
    %v48 = vsel %vm31, %v18, 0
    %v51 = vsel %vm31, %v19, 0
    %v54 = vsel %vm31, %v20, 0
    %v57 = vsel %vm31, %v21, 0
    %59 = vmatprep.subr.mxu0 0.0
    %60 = vmatpush1.msra.mxu0 %v30
    %61 = vmatprep.subr.mxu0 0.0
    %62 = vmatpush1.msra.mxu0 0.0
    %63 = vmatprep.subr.mxu0 0.0
    %64 = vmatpush1.msra.mxu0 0.0
    %65 = vmatprep.subr.mxu0 0.0
    %66 = vmatpush1.msra.mxu0 0.0
    %67 = vmatprep.subr.mxu0 0.0
    %68 = vmatpush1.msra.mxu0 0.0
    %69 = vmatprep.subr.mxu0 0.0
    %70 = vmatpush1.msra.mxu0 0.0
    %71 = vmatprep.subr.mxu0 0.0
    %72 = vmatpush1.msra.mxu0 0.0
    %73 = vmatprep.subr.mxu0 0.0
    %74 = vmatpush1.msra.mxu0 0.0
    %75 = vmatprep.subr.mxu0 0.0
    %76 = vmatpush1.msra.mxu0 0.0
    %77 = vmatprep.subr.mxu0 0.0
    %78 = vmatpush1.msra.mxu0 0.0
    %79 = vmatprep.subr.mxu0 0.0
    %80 = vmatpush1.msra.mxu0 0.0
    %81 = vmatprep.subr.mxu0 0.0
    %82 = vmatpush1.msra.mxu0 0.0
    %83 = vmatprep.subr.mxu0 0.0
    %84 = vmatpush1.msra.mxu0 0.0
    %85 = vmatprep.subr.mxu0 0.0
    %86 = vmatpush1.msra.mxu0 0.0
    %87 = vmatprep.subr.mxu0 0.0
    %88 = vmatpush1.msra.mxu0 0.0
    %89 = vmatprep.subr.mxu0 0.0
    %90 = vmatpush1.msra.mxu0 0.0
    %91 = vmatprep.subr.mxu0 0.0
    %92 = vmatpush1.msra.mxu0 0.0
    %93 = vmatprep.subr.mxu0 0.0
    %94 = vmatpush1.msra.mxu0 0.0
    %95 = vmatprep.subr.mxu0 0.0
    %96 = vmatpush1.msra.mxu0 0.0
    %97 = vmatprep.subr.mxu0 0.0
    %98 = vmatpush1.msra.mxu0 0.0
    %99 = vmatprep.subr.mxu0 0.0
    %100 = vmatpush1.msra.mxu0 0.0
    %101 = vmatprep.subr.mxu0 0.0
    %102 = vmatpush1.msra.mxu0 0.0
    %103 = vmatprep.subr.mxu0 0.0
    %104 = vmatpush1.msra.mxu0 0.0
    %105 = vmatprep.subr.mxu0 0.0
    %106 = vmatpush1.msra.mxu0 0.0
    %107 = vmatprep.subr.mxu0 0.0
    %108 = vmatpush1.msra.mxu0 0.0
    %109 = vmatprep.subr.mxu0 0.0
    %110 = vmatpush1.msra.mxu0 0.0
    %111 = vmatprep.subr.mxu0 0.0
    %112 = vmatpush1.msra.mxu0 0.0
    %113 = vmatprep.subr.mxu0 0.0
    %114 = vmatpush1.msra.mxu0 0.0
    %115 = vmatprep.subr.mxu0 0.0
    %116 = vmatpush1.msra.mxu0 0.0
    %117 = vmatprep.subr.mxu0 0.0
    %118 = vmatpush1.msra.mxu0 0.0
    %119 = vmatprep.subr.mxu0 0.0
    %120 = vmatpush1.msra.mxu0 0.0
    %121 = vmatprep.subr.mxu0 0.0
    %122 = vmatpush1.msra.mxu0 0.0
    %123 = vmatprep.mubr.f32.mxu0 0.0
    %124 = vmatmul.mubr.f32.gmra.mrb[0].mxu0 %v33
    %v125 = vpop.f32.mrb[0].mxu0
    %v126 = vadd.f32 0.0, %v125
    %v127 = vpop.f32.mrb[0].mxu0
    %128 = vmatprep.mubr.f32.mxu0 0.0
    %129 = vmatmul.mubr.f32.gmra.mrb[0].mxu0 %v36
    %v130 = vpop.f32.mrb[0].mxu0
    %v131 = vadd.f32 0.0, %v130
    %v132 = vpop.f32.mrb[0].mxu0
    %133 = vmatprep.mubr.f32.mxu0 0.0
    %134 = vmatmul.mubr.f32.gmra.mrb[0].mxu0 %v39
    %v135 = vpop.f32.mrb[0].mxu0
    %v136 = vadd.f32 0.0, %v135
    %v137 = vpop.f32.mrb[0].mxu0
    %138 = vmatprep.mubr.f32.mxu0 0.0
    %139 = vmatmul.mubr.f32.gmra.mrb[0].mxu0 %v42
    %v140 = vpop.f32.mrb[0].mxu0
    %v141 = vadd.f32 0.0, %v140
    %v142 = vpop.f32.mrb[0].mxu0
    %143 = vmatprep.mubr.f32.mxu0 0.0
    %144 = vmatmul.mubr.f32.gmra.mrb[0].mxu0 %v45
    %v145 = vpop.f32.mrb[0].mxu0
    %v146 = vadd.f32 0.0, %v145
    %v147 = vpop.f32.mrb[0].mxu0
    %148 = vmatprep.mubr.f32.mxu0 0.0
    %149 = vmatmul.mubr.f32.gmra.mrb[0].mxu0 %v48
    %v150 = vpop.f32.mrb[0].mxu0
    %v151 = vadd.f32 0.0, %v150
    %v152 = vpop.f32.mrb[0].mxu0
    %153 = vmatprep.mubr.f32.mxu0 0.0
    %154 = vmatmul.mubr.f32.gmra.mrb[0].mxu0 %v51
    %v155 = vpop.f32.mrb[0].mxu0
    %v156 = vadd.f32 0.0, %v155
    %v157 = vpop.f32.mrb[0].mxu0
    %158 = vmatprep.mubr.f32.mxu0 0.0
    %159 = vmatmul.mubr.f32.gmra.mrb[0].mxu0 %v54
    %v160 = vpop.f32.mrb[0].mxu0
    %v161 = vadd.f32 0.0, %v160
    %v162 = vpop.f32.mrb[0].mxu0
    %163 = vmatprep.mubr.f32.mxu0 0.0
    %164 = vmatmul.mubr.f32.gmra.mrb[0].mxu0 %v57
    %v165 = vpop.f32.mrb[0].mxu0
    %v166 = vadd.f32 0.0, %v165
    %v167 = vpop.f32.mrb[0].mxu0
    %168 = vdwg.mxu0
    %v169 = vld [vmem:[%s1 + $0x48] sm:$0xff]
    %v170 = vld [vmem:[%s1 + $0x50] sm:$0xff]
    %v171 = vld [vmem:[%s1 + $0x58] sm:$0xff]
    %v172 = vld [vmem:[%s1 + $0x60] sm:$0xff]
    %v173 = vld [vmem:[%s1 + $0x68] sm:$0xff]
    %v174 = vld [vmem:[%s1 + $0x70] sm:$0xff]
    %v175 = vld [vmem:[%s1 + $0x78] sm:$0xff]
    %v176 = vld [vmem:[%s1 + $0x80] sm:$0xff]
    %v177 = vld [vmem:[%s1 + $0x88] sm:$0xf]
    %v178 = vld [vmem:[%s1 + $0x90] sm:$0xf]
    %180 = vset.pattern.permute.xlu0 0
    %181 = vperm.xlu0 %180, %v169
    %v182 = vpop.permute.xlu0 %181
    %185 = vset.pattern.permute.xlu0 0
    %186 = vperm.xlu0 %185, %v170
    %v187 = vpop.permute.xlu0 %186
    %190 = vset.pattern.permute.xlu0 0
    %191 = vperm.xlu0 %190, %v171
    %v192 = vpop.permute.xlu0 %191
    %195 = vset.pattern.permute.xlu0 0
    %196 = vperm.xlu0 %195, %v172
    %v197 = vpop.permute.xlu0 %196
    %200 = vset.pattern.permute.xlu0 0
    %201 = vperm.xlu0 %200, %v173
    %v202 = vpop.permute.xlu0 %201
    %205 = vset.pattern.permute.xlu0 0
    %206 = vperm.xlu0 %205, %v174
    %v207 = vpop.permute.xlu0 %206
    %210 = vset.pattern.permute.xlu0 0
    %211 = vperm.xlu0 %210, %v175
    %v212 = vpop.permute.xlu0 %211
    %215 = vset.pattern.permute.xlu0 0
    %216 = vperm.xlu0 %215, %v176
    %v217 = vpop.permute.xlu0 %216
    %v219 = vadd.f32 %v131, %v182
    %v220 = vadd.f32 %v136, %v187
    %v221 = vadd.f32 %v141, %v192
    %v222 = vadd.f32 %v146, %v197
    %v223 = vadd.f32 %v151, %v202
    %v224 = vadd.f32 %v156, %v207
    %v225 = vadd.f32 %v161, %v212
    %v226 = vadd.f32 %v166, %v217
    %v227 = vsel %vm31, %v219, 0.0
    %v228 = vsel %vm31, %v220, 0.0
    %v229 = vadd.f32 %v227, %v228
    %v230 = vsel %vm31, %v221, 0.0
    %v231 = vadd.f32 %v229, %v230
    %v232 = vsel %vm31, %v222, 0.0
    %v233 = vadd.f32 %v231, %v232
    %v234 = vsel %vm31, %v223, 0.0
    %v235 = vadd.f32 %v233, %v234
    %v236 = vsel %vm31, %v224, 0.0
    %v237 = vadd.f32 %v235, %v236
    %v238 = vsel %vm31, %v225, 0.0
    %v239 = vadd.f32 %v237, %v238
    %v240 = vsel %vm31, %v226, 0.0
    %v241 = vadd.f32 %v239, %v240
    %v242 = vrot.slane %v241, 4
    %v243 = vadd.f32 %v241, %v242
    %v244 = vrot.slane %v243, 2
    %v245 = vadd.f32 %v243, %v244
    %v246 = vrot.slane %v245, 1
    %v247 = vadd.f32 %v245, %v246
    %v248 = vmul.f32 %v247, 0.015625
    %v249 = vmul.f32 %v219, %v219
    %v250 = vmul.f32 %v220, %v220
    %v251 = vmul.f32 %v221, %v221
    %v252 = vmul.f32 %v222, %v222
    %v253 = vmul.f32 %v223, %v223
    %v254 = vmul.f32 %v224, %v224
    %v255 = vmul.f32 %v225, %v225
    %v256 = vmul.f32 %v226, %v226
    %v257 = vsel %vm31, %v249, 0.0
    %v258 = vsel %vm31, %v250, 0.0
    %v259 = vadd.f32 %v257, %v258
    %v260 = vsel %vm31, %v251, 0.0
    %v261 = vadd.f32 %v259, %v260
    %v262 = vsel %vm31, %v252, 0.0
    %v263 = vadd.f32 %v261, %v262
    %v264 = vsel %vm31, %v253, 0.0
    %v265 = vadd.f32 %v263, %v264
    %v266 = vsel %vm31, %v254, 0.0
    %v267 = vadd.f32 %v265, %v266
    %v268 = vsel %vm31, %v255, 0.0
    %v269 = vadd.f32 %v267, %v268
    %v270 = vsel %vm31, %v256, 0.0
    %v271 = vadd.f32 %v269, %v270
    %v272 = vrot.slane %v271, 4
    %v273 = vadd.f32 %v271, %v272
    %v274 = vrot.slane %v273, 2
    %v275 = vadd.f32 %v273, %v274
    %v276 = vrot.slane %v275, 1
    %v277 = vadd.f32 %v275, %v276
    %v278 = vmul.f32 %v277, 0.015625
    %v279 = vmul.f32 %v248, %v248
    %v280 = vsub.f32 %v278, %v279
    %v281 = vadd.f32 %v280, 1e-05
    %v282 = vrsqrt.pop %v281
    %283 = vset.pattern.permute.xlu0 1
    %284 = vperm.xlu0 %283, %v169
    %v285 = vpop.permute.xlu0 %284
    %287 = vset.pattern.permute.xlu0 1
    %288 = vperm.xlu0 %287, %v170
    %v289 = vpop.permute.xlu0 %288
    %291 = vset.pattern.permute.xlu0 1
    %292 = vperm.xlu0 %291, %v171
    %v293 = vpop.permute.xlu0 %292
    %295 = vset.pattern.permute.xlu0 1
    %296 = vperm.xlu0 %295, %v172
    %v297 = vpop.permute.xlu0 %296
    %299 = vset.pattern.permute.xlu0 1
    %300 = vperm.xlu0 %299, %v173
    %v301 = vpop.permute.xlu0 %300
    %303 = vset.pattern.permute.xlu0 1
    %304 = vperm.xlu0 %303, %v174
    %v305 = vpop.permute.xlu0 %304
    %307 = vset.pattern.permute.xlu0 1
    %308 = vperm.xlu0 %307, %v175
    %v309 = vpop.permute.xlu0 %308
    %311 = vset.pattern.permute.xlu0 1
    %312 = vperm.xlu0 %311, %v176
    %v313 = vpop.permute.xlu0 %312
    %v315 = vmul.f32 %v282, %v285
    %v316 = vmul.f32 %v282, %v289
    %v317 = vmul.f32 %v282, %v293
    %v318 = vmul.f32 %v282, %v297
    %v319 = vmul.f32 %v282, %v301
    %v320 = vmul.f32 %v282, %v305
    %v321 = vmul.f32 %v282, %v309
    %v322 = vmul.f32 %v282, %v313
    %v323 = vsub.f32 %v219, %v248
    %v324 = vsub.f32 %v220, %v248
    %v325 = vsub.f32 %v221, %v248
    %v326 = vsub.f32 %v222, %v248
    %v327 = vsub.f32 %v223, %v248
    %v328 = vsub.f32 %v224, %v248
    %v329 = vsub.f32 %v225, %v248
    %v330 = vsub.f32 %v226, %v248
    %v331 = vmul.f32 %v323, %v315
    %v332 = vmul.f32 %v324, %v316
    %v333 = vmul.f32 %v325, %v317
    %v334 = vmul.f32 %v326, %v318
    %v335 = vmul.f32 %v327, %v319
    %v336 = vmul.f32 %v328, %v320
    %v337 = vmul.f32 %v329, %v321
    %v338 = vmul.f32 %v330, %v322
    %339 = vset.pattern.permute.xlu0 2
    %340 = vperm.xlu0 %339, %v169
    %v341 = vpop.permute.xlu0 %340
    %343 = vset.pattern.permute.xlu0 2
    %344 = vperm.xlu0 %343, %v170
    %v345 = vpop.permute.xlu0 %344
    %347 = vset.pattern.permute.xlu0 2
    %348 = vperm.xlu0 %347, %v171
    %v349 = vpop.permute.xlu0 %348
    %351 = vset.pattern.permute.xlu0 2
    %352 = vperm.xlu0 %351, %v172
    %v353 = vpop.permute.xlu0 %352
    %355 = vset.pattern.permute.xlu0 2
    %356 = vperm.xlu0 %355, %v173
    %v357 = vpop.permute.xlu0 %356
    %359 = vset.pattern.permute.xlu0 2
    %360 = vperm.xlu0 %359, %v174
    %v361 = vpop.permute.xlu0 %360
    %363 = vset.pattern.permute.xlu0 2
    %364 = vperm.xlu0 %363, %v175
    %v365 = vpop.permute.xlu0 %364
    %367 = vset.pattern.permute.xlu0 2
    %368 = vperm.xlu0 %367, %v176
    %v369 = vpop.permute.xlu0 %368
    %v371 = vadd.f32 %v331, %v341
    %v372 = vadd.f32 %v332, %v345
    %v373 = vadd.f32 %v333, %v349
    %v374 = vadd.f32 %v334, %v353
    %v375 = vadd.f32 %v335, %v357
    %v376 = vadd.f32 %v336, %v361
    %v377 = vadd.f32 %v337, %v365
    %v378 = vadd.f32 %v338, %v369
    %v379 = vmax.f32 %v371, 0.0
    %v380 = vmax.f32 %v372, 0.0
    %v381 = vmax.f32 %v373, 0.0
    %v382 = vmax.f32 %v374, 0.0
    %v383 = vmax.f32 %v375, 0.0
    %v384 = vmax.f32 %v376, 0.0
    %v385 = vmax.f32 %v377, 0.0
    %v386 = vmax.f32 %v378, 0.0
    %388 = vset.pattern.permute.xlu0 0
    %389 = vperm.xlu0 %388, %v178
    %v390 = vpop.permute.xlu0 %389
    %vm392 = vcmask 523264
    %v394 = vsel %vm392, %v177, 0
    %396 = vmatprep.subr.mxu0 0.0
    %397 = vmatpush1.msra.mxu0 %v379
    %398 = vmatprep.subr.mxu0 0.0
    %399 = vmatpush1.msra.mxu0 %v380
    %400 = vmatprep.subr.mxu0 0.0
    %401 = vmatpush1.msra.mxu0 %v381
    %402 = vmatprep.subr.mxu0 0.0
    %403 = vmatpush1.msra.mxu0 %v382
    %404 = vmatprep.subr.mxu0 0.0
    %405 = vmatpush1.msra.mxu0 %v383
    %406 = vmatprep.subr.mxu0 0.0
    %407 = vmatpush1.msra.mxu0 %v384
    %408 = vmatprep.subr.mxu0 0.0
    %409 = vmatpush1.msra.mxu0 %v385
    %410 = vmatprep.subr.mxu0 0.0
    %411 = vmatpush1.msra.mxu0 %v386
    %412 = vmatprep.subr.mxu0 0.0
    %413 = vmatpush1.msra.mxu0 0.0
    %414 = vmatprep.subr.mxu0 0.0
    %415 = vmatpush1.msra.mxu0 0.0
    %416 = vmatprep.subr.mxu0 0.0
    %417 = vmatpush1.msra.mxu0 0.0
    %418 = vmatprep.subr.mxu0 0.0
    %419 = vmatpush1.msra.mxu0 0.0
    %420 = vmatprep.subr.mxu0 0.0
    %421 = vmatpush1.msra.mxu0 0.0
    %422 = vmatprep.subr.mxu0 0.0
    %423 = vmatpush1.msra.mxu0 0.0
    %424 = vmatprep.subr.mxu0 0.0
    %425 = vmatpush1.msra.mxu0 0.0
    %426 = vmatprep.subr.mxu0 0.0
    %427 = vmatpush1.msra.mxu0 0.0
    %428 = vmatprep.subr.mxu0 0.0
    %429 = vmatpush1.msra.mxu0 0.0
    %430 = vmatprep.subr.mxu0 0.0
    %431 = vmatpush1.msra.mxu0 0.0
    %432 = vmatprep.subr.mxu0 0.0
    %433 = vmatpush1.msra.mxu0 0.0
    %434 = vmatprep.subr.mxu0 0.0
    %435 = vmatpush1.msra.mxu0 0.0
    %436 = vmatprep.subr.mxu0 0.0
    %437 = vmatpush1.msra.mxu0 0.0
    %438 = vmatprep.subr.mxu0 0.0
    %439 = vmatpush1.msra.mxu0 0.0
    %440 = vmatprep.subr.mxu0 0.0
    %441 = vmatpush1.msra.mxu0 0.0
    %442 = vmatprep.subr.mxu0 0.0
    %443 = vmatpush1.msra.mxu0 0.0
    %444 = vmatprep.subr.mxu0 0.0
    %445 = vmatpush1.msra.mxu0 0.0
    %446 = vmatprep.subr.mxu0 0.0
    %447 = vmatpush1.msra.mxu0 0.0
    %448 = vmatprep.subr.mxu0 0.0
    %449 = vmatpush1.msra.mxu0 0.0
    %450 = vmatprep.subr.mxu0 0.0
    %451 = vmatpush1.msra.mxu0 0.0
    %452 = vmatprep.subr.mxu0 0.0
    %453 = vmatpush1.msra.mxu0 0.0
    %454 = vmatprep.subr.mxu0 0.0
    %455 = vmatpush1.msra.mxu0 0.0
    %456 = vmatprep.subr.mxu0 0.0
    %457 = vmatpush1.msra.mxu0 0.0
    %458 = vmatprep.subr.mxu0 0.0
    %459 = vmatpush1.msra.mxu0 0.0
    %460 = vmatprep.mubr.f32.mxu0 0.0
    %461 = vmatmul.mubr.f32.gmra.mrb[0].mxu0 %v394
    %v462 = vpop.f32.mrb[0].mxu0
    %v463 = vadd.f32 %v390, %v462
    %v464 = vpop.f32.mrb[0].mxu0
    %465 = vdwg.mxu0
    %v466 = vadd.f32 %v126, %v463
    %vm467 = vcmask 60416
    %v468 = vsel %vm467, %v466, -inf
    %v469 = vrot.slane %v468, 4
    %v470 = vmax.f32 %v468, %v469
    %v471 = vrot.slane %v470, 2
    %v472 = vmax.f32 %v470, %v471
    %v473 = vrot.slane %v472, 1
    %v474 = vmax.f32 %v472, %v473
    %v475 = vsub.f32 %v466, %v474
    %v476 = vmul.f32 %v475, 1.442695
    %v477 = vpow.pop %v476
    %v478 = vsel %vm467, %v477, 0.0
    %v479 = vrot.slane %v478, 4
    %v480 = vadd.f32 %v478, %v479
    %v481 = vrot.slane %v480, 2
    %v482 = vadd.f32 %v480, %v481
    %v483 = vrot.slane %v482, 1
    %v484 = vadd.f32 %v482, %v483
    %v485 = vrcp.pop %v484
    %v486 = vmul.f32 %v477, %v485
    %487 = vst.msk [vmem:[#allocation2] sm:$0xf] %vm467, %v486
    // Predicated region
    $region10: #{tpu_custom_call.1} parent=1 // pred_check
      _
    $region11: #{tpu_custom_call.1} parent=1 // pred_check_branch
      %489 = sbr.rel (0) target = $region13
    $region12: #{tpu_custom_call.1} parent=1 // pred_region
      %s491 = ssub.s32 64, 64
      %492 = vsyncadd [#allocation3], %s491
      %s494 = sshll.u32 [#allocation2], 4
      %s495 = int_to_ptr.vmem [resolvable:$true] %s494
      %497 = dma.vmem_to_hbm [thread:$0]  %s495, 64, %s2, [#allocation3]
    $region13: #{tpu_custom_call.1} parent=1 // pred_fallthru
      _
    // Predicated region
    $region14: #{tpu_custom_call.1} parent=1 // pred_check
      _
    $region15: #{tpu_custom_call.1} parent=1 // pred_check_branch
      %499 = sbr.rel (0) target = $region17
    $region16: #{tpu_custom_call.1} parent=1 // pred_region
      %500 = dma.done [#allocation3], 64
    $region17: #{tpu_custom_call.1} parent=1 // pred_fallthru
      _
    %501 = vsyncpa [#allocation3], 1

</llo_original>
